<compile_context>
chip_gen: v7x
topology: tpu7x:2x2x1
jax: 0.10.0
libtpu: 0.0.40
codegen_flags: <defaults>
</compile_context>

<pallas_src>
import jax
import jax.numpy as jnp
from jax import lax
from jax.experimental import pallas as pl
from jax.experimental.pallas import tpu as pltpu

LN_EPS = 1e-5


def _layernorm(x, gamma, beta):
    mu = jnp.mean(x, axis=-1, keepdims=True)
    var = jnp.mean((x - mu) ** 2, axis=-1, keepdims=True)
    return (x - mu) * lax.rsqrt(var + LN_EPS) * gamma + beta


def _gelu_exact(x):
    # PyTorch nn.GELU() default (approximate='none'): 0.5*x*(1+erf(x/sqrt(2)))
    # TODO(synk): on v5e consider tanh-approximate GELU (EUP slot) — numerics change vs PyTorch.
    return 0.5 * x * (1.0 + lax.erf(x * (2.0 ** -0.5)))


# --------------------------------------------------------------------------------------
# Kernel A: LayerNorm1 + fused QKV projection, written head-major.
# --------------------------------------------------------------------------------------
def ln1_qkv_kernel(x_ref, wqkv_ref, ln1g_ref, ln1b_ref, q_ref, k_ref, v_ref):
    x = x_ref[0].astype(jnp.float32)                     # (Tr, C), stats in f32
    C = x.shape[-1]
    H = q_ref.shape[1]
    hs = q_ref.shape[-1]
    mm_dtype = wqkv_ref.dtype                            # bf16 weights => bf16 MXU, f32 accum

    xln1 = _layernorm(x, ln1g_ref[0], ln1b_ref[0])
    qkv = jnp.dot(xln1.astype(mm_dtype), wqkv_ref[...],
                  preferred_element_type=jnp.float32)    # (Tr, 3C); q columns pre-scaled

    # Single relayout point: lane-slice each head once per row tile and store head-major
    # so the attention kernel consumes clean (H, T, hs) blocks (no per-tile head shuffles).
    for h in range(H):
        q_ref[0, h] = qkv[:, h * hs:(h + 1) * hs].astype(q_ref.dtype)
        k_ref[0, h] = qkv[:, C + h * hs:C + (h + 1) * hs].astype(k_ref.dtype)
        v_ref[0, h] = qkv[:, 2 * C + h * hs:2 * C + (h + 1) * hs].astype(v_ref.dtype)


# --------------------------------------------------------------------------------------
# Kernel B: flash attention (online softmax) + out-proj + residual + LN2 + FFN + residual.
# --------------------------------------------------------------------------------------
def flash_block_kernel(x_ref, q_ref, k_ref, v_ref,
                       wo_ref, bo_ref, ln2g_ref, ln2b_ref,
                       w1_ref, b1_ref, w2_ref, b2_ref,
                       out_ref, m_sc, l_sc, acc_sc):
    qi = pl.program_id(1)
    ki = pl.program_id(2)
    nk = pl.num_programs(2)
    tile_t = x_ref.shape[1]
    mm_dtype = wo_ref.dtype

    @pl.when(ki == 0)
    def _init():
        m_sc[...] = jnp.full(m_sc.shape, -jnp.inf, m_sc.dtype)
        l_sc[...] = jnp.zeros(l_sc.shape, l_sc.dtype)
        acc_sc[...] = jnp.zeros(acc_sc.shape, acc_sc.dtype)

    # Causal tile skipping: tiles entirely above the diagonal contribute nothing.
    @pl.when(ki <= qi)
    def _online_softmax_step():
        q = q_ref[0]                                     # (H, Tq, hs), scale folded into Wq
        k = k_ref[0]                                     # (H, Tk, hs)
        v = v_ref[0]                                     # (H, Tk, hs)
        s = jnp.einsum("hqd,hkd->hqk", q, k,
                       preferred_element_type=jnp.float32)   # (H, Tq, Tk) for this tile only

        # 2-D causal mask (broadcast over heads) built from global row/col indices.
        rows = qi * tile_t + lax.broadcasted_iota(jnp.int32, (tile_t, tile_t), 0)
        cols = ki * tile_t + lax.broadcasted_iota(jnp.int32, (tile_t, tile_t), 1)
        s = jnp.where((cols <= rows)[None, :, :], s, -jnp.inf)

        m_prev = m_sc[...]
        m_new = jnp.maximum(m_prev, jnp.max(s, axis=-1, keepdims=True))
        alpha = jnp.exp(m_prev - m_new)                  # first computed tile: exp(-inf)=0
        p = jnp.exp(s - m_new)
        l_sc[...] = alpha * l_sc[...] + jnp.sum(p, axis=-1, keepdims=True)
        acc_sc[...] = alpha * acc_sc[...] + jnp.einsum(
            "hqk,hkd->hqd", p.astype(v.dtype), v,
            preferred_element_type=jnp.float32)
        m_sc[...] = m_new

    @pl.when(ki == nk - 1)
    def _finalize():
        # Normalize (EUP approximate reciprocal) and project back per head:
        # sum over heads happens with cheap major-axis adds, no lane concat.
        o = acc_sc[...] * pl.reciprocal(l_sc[...], approx=True)        # (H, Tq, hs)
        sa = jnp.einsum("hqd,hdc->hqc", o.astype(mm_dtype), wo_ref[...],
                        preferred_element_type=jnp.float32).sum(axis=0)
        sa = sa + bo_ref[0]

        x1 = x_ref[0].astype(jnp.float32) + sa                          # residual 1

        xln2 = _layernorm(x1, ln2g_ref[0], ln2b_ref[0])
        h1 = jnp.dot(xln2.astype(mm_dtype), w1_ref[...],
                     preferred_element_type=jnp.float32) + b1_ref[0]    # (Tq, 4C) only
        h1 = _gelu_exact(h1)
        ff = jnp.dot(h1.astype(mm_dtype), w2_ref[...],
                     preferred_element_type=jnp.float32) + b2_ref[0]

        out_ref[0] = (x1 + ff).astype(out_ref.dtype)                    # residual 2


# --------------------------------------------------------------------------------------
# Wrapper-side helpers
# --------------------------------------------------------------------------------------
def _pick_vmem_limit():
    # v5e/v6e: 128 MiB physical VMEM per TC, v7x: 64 MiB. Leave headroom for semaphores
    # and internal scratch instead of requesting the full budget.
    try:
        cap = int(pltpu.get_tpu_info().vmem_capacity_bytes)
    except Exception:
        cap = 64 * 1024 * 1024
    return max(32 * 1024 * 1024, min(cap - 12 * 1024 * 1024, 112 * 1024 * 1024))


def _invariant_spec(shape, n_grid):
    """Grid-invariant (weight) BlockSpec; single-buffered since it is never re-fetched."""
    zeros = (0,) * len(shape)
    imap = (lambda b, r: zeros) if n_grid == 2 else (lambda b, q, k: zeros)
    try:
        return pl.BlockSpec(shape, imap, pipeline_mode=pl.Buffered(1))
    except Exception:  # older jax without pipeline_mode / Buffered
        return pl.BlockSpec(shape, imap)


def _pick_tile(T):
    for t in (256, 128, 64, 32, 16, 8):
        if T % t == 0:
            return t
    return T


def prepare_block_params(params, n_head, dtype=None):
    """One-time parameter prep (hoisted out of the per-call wrapper):
    fold 1/sqrt(hs) into Wq, fuse QKV, reshape Wo per-head, reshape 1-D params to (1,N).
    Pass dtype=jnp.bfloat16 for the production bf16-MXU path."""
    (wq, wk, wv, wo, bo, ln1g, ln1b, ln2g, ln2b, w1, b1, w2, b2) = params
    C = wq.shape[0]
    assert C % n_head == 0
    hs = C // n_head
    scale = hs ** -0.5

    as2d = lambda a: a.reshape(1, -1)
    p = dict(
        wqkv=jnp.concatenate([wq * scale, wk, wv], axis=1),   # (C, 3C), scale folded into q
        wo_h=wo.reshape(n_head, hs, C),                        # per-head out-projection
        bo=as2d(bo),
        ln1g=as2d(ln1g), ln1b=as2d(ln1b),
        ln2g=as2d(ln2g), ln2b=as2d(ln2b),
        w1=w1, b1=as2d(b1), w2=w2, b2=as2d(b2),
    )
    if dtype is not None:
        for k in ("wqkv", "wo_h", "w1", "w2"):                 # matmul weights only
            p[k] = p[k].astype(dtype)
    return p


def transformer_block(x, p, tile_t=None):
    B, T, C = x.shape
    n_head = p["wo_h"].shape[0]
    hs = C // n_head
    if tile_t is None:
        tile_t = _pick_tile(T)
    assert T % tile_t == 0, "T must be divisible by tile_t (no padding path yet)"
    nt = T // tile_t
    vmem_limit = _pick_vmem_limit()
    qkv_dtype = p["wqkv"].dtype

    # ---- Kernel A: LN1 + fused QKV, head-major outputs -------------------------------
    q_hm, k_hm, v_hm = pl.pallas_call(
        ln1_qkv_kernel,
        out_shape=(
            jax.ShapeDtypeStruct((B, n_head, T, hs), qkv_dtype),
            jax.ShapeDtypeStruct((B, n_head, T, hs), qkv_dtype),
            jax.ShapeDtypeStruct((B, n_head, T, hs), qkv_dtype),
        ),
        grid_spec=pltpu.PrefetchScalarGridSpec(
            num_scalar_prefetch=0,
            grid=(B, nt),
            in_specs=[
                pl.BlockSpec((1, tile_t, C), lambda b, r: (b, r, 0)),
                _invariant_spec((C, 3 * C), 2),
                _invariant_spec((1, C), 2),
                _invariant_spec((1, C), 2),
            ],
            out_specs=[
                pl.BlockSpec((1, n_head, tile_t, hs), lambda b, r: (b, 0, r, 0)),
                pl.BlockSpec((1, n_head, tile_t, hs), lambda b, r: (b, 0, r, 0)),
                pl.BlockSpec((1, n_head, tile_t, hs), lambda b, r: (b, 0, r, 0)),
            ],
        ),
        compiler_params=pltpu.CompilerParams(
            dimension_semantics=("parallel", "parallel"),
            vmem_limit_bytes=vmem_limit),
    )(x, p["wqkv"], p["ln1g"], p["ln1b"])

    # ---- Kernel B: flash attention + out-proj + residuals + LN2 + FFN ----------------
    out = pl.pallas_call(
        flash_block_kernel,
        out_shape=jax.ShapeDtypeStruct((B, T, C), x.dtype),
        grid_spec=pltpu.PrefetchScalarGridSpec(
            num_scalar_prefetch=0,
            grid=(B, nt, nt),                              # kv axis innermost, 'arbitrary'
            in_specs=[
                pl.BlockSpec((1, tile_t, C), lambda b, q, k: (b, q, 0)),              # x (residual)
                pl.BlockSpec((1, n_head, tile_t, hs), lambda b, q, k: (b, 0, q, 0)),  # q tile
                pl.BlockSpec((1, n_head, tile_t, hs), lambda b, q, k: (b, 0, k, 0)),  # k tile
                pl.BlockSpec((1, n_head, tile_t, hs), lambda b, q, k: (b, 0, k, 0)),  # v tile
                _invariant_spec((n_head, hs, C), 3),       # wo_h
                _invariant_spec((1, C), 3),                # bo
                _invariant_spec((1, C), 3),                # ln2 gamma
                _invariant_spec((1, C), 3),                # ln2 beta
                _invariant_spec((C, 4 * C), 3),            # w1
                _invariant_spec((1, 4 * C), 3),            # b1
                _invariant_spec((4 * C, C), 3),            # w2
                _invariant_spec((1, C), 3),                # b2
            ],
            out_specs=pl.BlockSpec((1, tile_t, C), lambda b, q, k: (b, q, 0)),
            scratch_shapes=[
                pltpu.VMEM((n_head, tile_t, 1), jnp.float32),   # m (running max)
                pltpu.VMEM((n_head, tile_t, 1), jnp.float32),   # l (running denom)
                pltpu.VMEM((n_head, tile_t, hs), jnp.float32),  # acc (running numerator)
            ],
        ),
        compiler_params=pltpu.CompilerParams(
            dimension_semantics=("parallel", "parallel", "arbitrary"),
            vmem_limit_bytes=vmem_limit),
    )(x, q_hm, k_hm, v_hm, p["wo_h"], p["bo"], p["ln2g"], p["ln2b"],
      p["w1"], p["b1"], p["w2"], p["b2"])
    return out


# --------------------------------------------------------------------------------------
# Pure-JAX reference for validation
# --------------------------------------------------------------------------------------
def reference_block(x, params, n_head):
    (wq, wk, wv, wo, bo, ln1g, ln1b, ln2g, ln2b, w1, b1, w2, b2) = params
    B, T, C = x.shape
    hs = C // n_head
    xf = x.astype(jnp.float32)

    xln1 = _layernorm(xf, ln1g, ln1b)
    q = (xln1 @ wq).reshape(B, T, n_head, hs).transpose(0, 2, 1, 3)
    k = (xln1 @ wk).reshape(B, T, n_head, hs).transpose(0, 2, 1, 3)
    v = (xln1 @ wv).reshape(B, T, n_head, hs).transpose(0, 2, 1, 3)
    wei = jnp.einsum("bhtd,bhsd->bhts", q, k) * hs ** -0.5
    mask = jnp.tril(jnp.ones((T, T), bool))
    wei = jnp.where(mask, wei, -jnp.inf)
    wei = jax.nn.softmax(wei, axis=-1)
    sa = jnp.einsum("bhts,bhsd->bhtd", wei, v).transpose(0, 2, 1, 3).reshape(B, T, C)
    sa = sa @ wo + bo
    x1 = xf + sa

    xln2 = _layernorm(x1, ln2g, ln2b)
    ff = _gelu_exact(xln2 @ w1 + b1) @ w2 + b2
    return (x1 + ff).astype(x.dtype)


if __name__ == "__main__":
    # Small demo config (T chosen so the q/kv tiling + causal tile skipping is exercised).
    B, T, C, n_head = 2, 16, 32, 4

    key = jax.random.PRNGKey(0)
    keys = jax.random.split(key, 12)
    s = 0.02
    x = jax.random.normal(keys[0], (B, T, C), jnp.float32)

    wq = s * jax.random.normal(keys[1], (C, C), jnp.float32)
    wk = s * jax.random.normal(keys[2], (C, C), jnp.float32)
    wv = s * jax.random.normal(keys[3], (C, C), jnp.float32)
    wo = s * jax.random.normal(keys[4], (C, C), jnp.float32)
    bo = s * jax.random.normal(keys[5], (C,), jnp.float32)
    ln1g = jnp.ones((C,), jnp.float32)
    ln1b = jnp.zeros((C,), jnp.float32)
    ln2g = jnp.ones((C,), jnp.float32)
    ln2b = jnp.zeros((C,), jnp.float32)
    w1 = s * jax.random.normal(keys[6], (C, 4 * C), jnp.float32)
    b1 = s * jax.random.normal(keys[7], (4 * C,), jnp.float32)
    w2 = s * jax.random.normal(keys[8], (4 * C, C), jnp.float32)
    b2 = s * jax.random.normal(keys[9], (C,), jnp.float32)

    params = (wq, wk, wv, wo, bo, ln1g, ln1b, ln2g, ln2b, w1, b1, w2, b2)

    # f32 weights here for tight parity with the reference; use dtype=jnp.bfloat16 in production.
    prepped = prepare_block_params(params, n_head)

    out = transformer_block(x, prepped, tile_t=8)   # 2 q-tiles x 2 kv-tiles, causal skip exercised
    out = jax.block_until_ready(out)

    ref = reference_block(x, params, n_head)
    assert out.shape == (B, T, C)
    # tolerance 1e-3: softmax denominator uses the EUP approximate reciprocal (per review).
    assert jnp.allclose(out, ref, atol=1e-3, rtol=1e-3), "mismatch vs reference"

    print("KERNEL_OK")
</pallas_src>

<mosaic_0001>
module attributes {stable_mosaic.version = 11 : i64} {
  func.func @ln1_qkv_kernel(%arg0: i32, %arg1: i32, %arg2: memref<1x8x32xf32, #tpu.memory_space<vmem>>, %arg3: memref<32x96xf32, #tpu.memory_space<vmem>>, %arg4: memref<1x32xf32, #tpu.memory_space<vmem>>, %arg5: memref<1x32xf32, #tpu.memory_space<vmem>>, %arg6: memref<1x4x8x8xf32, #tpu.memory_space<vmem>>, %arg7: memref<1x4x8x8xf32, #tpu.memory_space<vmem>>, %arg8: memref<1x4x8x8xf32, #tpu.memory_space<vmem>>) attributes {dimension_semantics = [#tpu.dimension_semantics<parallel>, #tpu.dimension_semantics<parallel>], iteration_bounds = array<i64: 2, 2>, scalar_prefetch = 0 : i64, scratch_operands = 0 : i64, tpu.core_type = #tpu.core_type<tc>, window_params = [{transform_indices = @transform_0, window_bounds = array<i64: 1, 8, 32>}, {pipeline_mode = #tpu.pipeline_mode<synchronous>, transform_indices = @transform_1, window_bounds = array<i64: 32, 96>}, {pipeline_mode = #tpu.pipeline_mode<synchronous>, transform_indices = @transform_2, window_bounds = array<i64: 1, 32>}, {pipeline_mode = #tpu.pipeline_mode<synchronous>, transform_indices = @transform_3, window_bounds = array<i64: 1, 32>}, {transform_indices = @transform_4, window_bounds = array<i64: 1, 4, 8, 8>}, {transform_indices = @transform_5, window_bounds = array<i64: 1, 4, 8, 8>}, {transform_indices = @transform_6, window_bounds = array<i64: 1, 4, 8, 8>}]} {
    %c0 = arith.constant 0 : index
    %c0_0 = arith.constant 0 : index
    %c0_1 = arith.constant 0 : index
    %0 = vector.load %arg2[%c0, %c0_0, %c0_1] : memref<1x8x32xf32, #tpu.memory_space<vmem>>, vector<1x8x32xf32>
    %1 = vector.shape_cast %0 : vector<1x8x32xf32> to vector<8x32xf32>
    %c0_2 = arith.constant 0 : index
    %c0_3 = arith.constant 0 : index
    %2 = vector.load %arg4[%c0_2, %c0_3] : memref<1x32xf32, #tpu.memory_space<vmem>>, vector<1x32xf32>
    %3 = vector.shape_cast %2 : vector<1x32xf32> to vector<32xf32>
    %c0_4 = arith.constant 0 : index
    %c0_5 = arith.constant 0 : index
    %4 = vector.load %arg5[%c0_4, %c0_5] : memref<1x32xf32, #tpu.memory_space<vmem>>, vector<1x32xf32>
    %5 = vector.shape_cast %4 : vector<1x32xf32> to vector<32xf32>
    %cst = arith.constant dense<0.000000e+00> : vector<8xf32>
    %6 = vector.multi_reduction <add>, %1, %cst [1] : vector<8x32xf32> to vector<8xf32>
    %7 = vector.shape_cast %6 : vector<8xf32> to vector<8x1xf32>
    %cst_6 = arith.constant 3.200000e+01 : f32
    %8 = vector.broadcast %cst_6 : f32 to vector<8x1xf32>
    %9 = arith.divf %7, %8 : vector<8x1xf32>
    %10 = vector.broadcast %9 : vector<8x1xf32> to vector<8x32xf32>
    %11 = arith.subf %1, %10 : vector<8x32xf32>
    %12 = arith.mulf %11, %11 : vector<8x32xf32>
    %cst_7 = arith.constant dense<0.000000e+00> : vector<8xf32>
    %13 = vector.multi_reduction <add>, %12, %cst_7 [1] : vector<8x32xf32> to vector<8xf32>
    %14 = vector.shape_cast %13 : vector<8xf32> to vector<8x1xf32>
    %cst_8 = arith.constant 3.200000e+01 : f32
    %15 = vector.broadcast %cst_8 : f32 to vector<8x1xf32>
    %16 = arith.divf %14, %15 : vector<8x1xf32>
    %17 = vector.broadcast %9 : vector<8x1xf32> to vector<8x32xf32>
    %18 = arith.subf %1, %17 : vector<8x32xf32>
    %cst_9 = arith.constant 9.99999974E-6 : f32
    %19 = vector.broadcast %cst_9 : f32 to vector<8x1xf32>
    %20 = arith.addf %16, %19 : vector<8x1xf32>
    %21 = math.rsqrt %20 : vector<8x1xf32>
    %22 = vector.broadcast %21 : vector<8x1xf32> to vector<8x32xf32>
    %23 = arith.mulf %18, %22 : vector<8x32xf32>
    %24 = vector.shape_cast %3 : vector<32xf32> to vector<1x32xf32>
    %25 = vector.broadcast %24 : vector<1x32xf32> to vector<8x32xf32>
    %26 = arith.mulf %23, %25 : vector<8x32xf32>
    %27 = vector.shape_cast %5 : vector<32xf32> to vector<1x32xf32>
    %28 = vector.broadcast %27 : vector<1x32xf32> to vector<8x32xf32>
    %29 = arith.addf %26, %28 : vector<8x32xf32>
    %c0_10 = arith.constant 0 : index
    %c0_11 = arith.constant 0 : index
    %30 = vector.load %arg3[%c0_10, %c0_11] : memref<32x96xf32, #tpu.memory_space<vmem>>, vector<32x96xf32>
    %cst_12 = arith.constant dense<0.000000e+00> : vector<8x96xf32>
    %31 = tpu.matmul %29, %30, %cst_12 {dimension_numbers = #tpu.dot_dimension_numbers<[1], [0], [0], [1], [0, 0, 1, 1], [], []>} : vector<8x32xf32>, vector<32x96xf32>, vector<8x96xf32> -> vector<8x96xf32>
    %32 = vector.extract_strided_slice %31 {offsets = [0, 0], sizes = [8, 8], strides = [1, 1]} : vector<8x96xf32> to vector<8x8xf32>
    %c0_13 = arith.constant 0 : index
    %c0_14 = arith.constant 0 : index
    %c0_15 = arith.constant 0 : index
    %c0_16 = arith.constant 0 : index
    %33 = vector.load %arg6[%c0_13, %c0_14, %c0_15, %c0_16] : memref<1x4x8x8xf32, #tpu.memory_space<vmem>>, vector<1x1x8x8xf32>
    %34 = vector.shape_cast %33 : vector<1x1x8x8xf32> to vector<8x8xf32>
    %35 = vector.shape_cast %32 : vector<8x8xf32> to vector<1x1x8x8xf32>
    tpu.vector_store %arg6[%c0_13, %c0_14, %c0_15, %c0_16], %35 {strides = array<i32>} : memref<1x4x8x8xf32, #tpu.memory_space<vmem>>, vector<1x1x8x8xf32>,
    %36 = vector.extract_strided_slice %31 {offsets = [0, 32], sizes = [8, 8], strides = [1, 1]} : vector<8x96xf32> to vector<8x8xf32>
    %c0_17 = arith.constant 0 : index
    %c0_18 = arith.constant 0 : index
    %c0_19 = arith.constant 0 : index
    %c0_20 = arith.constant 0 : index
    %37 = vector.load %arg7[%c0_17, %c0_18, %c0_19, %c0_20] : memref<1x4x8x8xf32, #tpu.memory_space<vmem>>, vector<1x1x8x8xf32>
    %38 = vector.shape_cast %37 : vector<1x1x8x8xf32> to vector<8x8xf32>
    %39 = vector.shape_cast %36 : vector<8x8xf32> to vector<1x1x8x8xf32>
    tpu.vector_store %arg7[%c0_17, %c0_18, %c0_19, %c0_20], %39 {strides = array<i32>} : memref<1x4x8x8xf32, #tpu.memory_space<vmem>>, vector<1x1x8x8xf32>,
    %40 = vector.extract_strided_slice %31 {offsets = [0, 64], sizes = [8, 8], strides = [1, 1]} : vector<8x96xf32> to vector<8x8xf32>
    %c0_21 = arith.constant 0 : index
    %c0_22 = arith.constant 0 : index
    %c0_23 = arith.constant 0 : index
    %c0_24 = arith.constant 0 : index
    %41 = vector.load %arg8[%c0_21, %c0_22, %c0_23, %c0_24] : memref<1x4x8x8xf32, #tpu.memory_space<vmem>>, vector<1x1x8x8xf32>
    %42 = vector.shape_cast %41 : vector<1x1x8x8xf32> to vector<8x8xf32>
    %43 = vector.shape_cast %40 : vector<8x8xf32> to vector<1x1x8x8xf32>
    tpu.vector_store %arg8[%c0_21, %c0_22, %c0_23, %c0_24], %43 {strides = array<i32>} : memref<1x4x8x8xf32, #tpu.memory_space<vmem>>, vector<1x1x8x8xf32>,
    %44 = vector.extract_strided_slice %31 {offsets = [0, 8], sizes = [8, 8], strides = [1, 1]} : vector<8x96xf32> to vector<8x8xf32>
    %c0_25 = arith.constant 0 : index
    %c1 = arith.constant 1 : index
    %c0_26 = arith.constant 0 : index
    %c0_27 = arith.constant 0 : index
    %45 = vector.load %arg6[%c0_25, %c1, %c0_26, %c0_27] : memref<1x4x8x8xf32, #tpu.memory_space<vmem>>, vector<1x1x8x8xf32>
    %46 = vector.shape_cast %45 : vector<1x1x8x8xf32> to vector<8x8xf32>
    %47 = vector.shape_cast %44 : vector<8x8xf32> to vector<1x1x8x8xf32>
    tpu.vector_store %arg6[%c0_25, %c1, %c0_26, %c0_27], %47 {strides = array<i32>} : memref<1x4x8x8xf32, #tpu.memory_space<vmem>>, vector<1x1x8x8xf32>,
    %48 = vector.extract_strided_slice %31 {offsets = [0, 40], sizes = [8, 8], strides = [1, 1]} : vector<8x96xf32> to vector<8x8xf32>
    %c0_28 = arith.constant 0 : index
    %c1_29 = arith.constant 1 : index
    %c0_30 = arith.constant 0 : index
    %c0_31 = arith.constant 0 : index
    %49 = vector.load %arg7[%c0_28, %c1_29, %c0_30, %c0_31] : memref<1x4x8x8xf32, #tpu.memory_space<vmem>>, vector<1x1x8x8xf32>
    %50 = vector.shape_cast %49 : vector<1x1x8x8xf32> to vector<8x8xf32>
    %51 = vector.shape_cast %48 : vector<8x8xf32> to vector<1x1x8x8xf32>
    tpu.vector_store %arg7[%c0_28, %c1_29, %c0_30, %c0_31], %51 {strides = array<i32>} : memref<1x4x8x8xf32, #tpu.memory_space<vmem>>, vector<1x1x8x8xf32>,
    %52 = vector.extract_strided_slice %31 {offsets = [0, 72], sizes = [8, 8], strides = [1, 1]} : vector<8x96xf32> to vector<8x8xf32>
    %c0_32 = arith.constant 0 : index
    %c1_33 = arith.constant 1 : index
    %c0_34 = arith.constant 0 : index
    %c0_35 = arith.constant 0 : index
    %53 = vector.load %arg8[%c0_32, %c1_33, %c0_34, %c0_35] : memref<1x4x8x8xf32, #tpu.memory_space<vmem>>, vector<1x1x8x8xf32>
    %54 = vector.shape_cast %53 : vector<1x1x8x8xf32> to vector<8x8xf32>
    %55 = vector.shape_cast %52 : vector<8x8xf32> to vector<1x1x8x8xf32>
    tpu.vector_store %arg8[%c0_32, %c1_33, %c0_34, %c0_35], %55 {strides = array<i32>} : memref<1x4x8x8xf32, #tpu.memory_space<vmem>>, vector<1x1x8x8xf32>,
    %56 = vector.extract_strided_slice %31 {offsets = [0, 16], sizes = [8, 8], strides = [1, 1]} : vector<8x96xf32> to vector<8x8xf32>
    %c0_36 = arith.constant 0 : index
    %c2 = arith.constant 2 : index
    %c0_37 = arith.constant 0 : index
    %c0_38 = arith.constant 0 : index
    %57 = vector.load %arg6[%c0_36, %c2, %c0_37, %c0_38] : memref<1x4x8x8xf32, #tpu.memory_space<vmem>>, vector<1x1x8x8xf32>
    %58 = vector.shape_cast %57 : vector<1x1x8x8xf32> to vector<8x8xf32>
    %59 = vector.shape_cast %56 : vector<8x8xf32> to vector<1x1x8x8xf32>
    tpu.vector_store %arg6[%c0_36, %c2, %c0_37, %c0_38], %59 {strides = array<i32>} : memref<1x4x8x8xf32, #tpu.memory_space<vmem>>, vector<1x1x8x8xf32>,
    %60 = vector.extract_strided_slice %31 {offsets = [0, 48], sizes = [8, 8], strides = [1, 1]} : vector<8x96xf32> to vector<8x8xf32>
    %c0_39 = arith.constant 0 : index
    %c2_40 = arith.constant 2 : index
    %c0_41 = arith.constant 0 : index
    %c0_42 = arith.constant 0 : index
    %61 = vector.load %arg7[%c0_39, %c2_40, %c0_41, %c0_42] : memref<1x4x8x8xf32, #tpu.memory_space<vmem>>, vector<1x1x8x8xf32>
    %62 = vector.shape_cast %61 : vector<1x1x8x8xf32> to vector<8x8xf32>
    %63 = vector.shape_cast %60 : vector<8x8xf32> to vector<1x1x8x8xf32>
    tpu.vector_store %arg7[%c0_39, %c2_40, %c0_41, %c0_42], %63 {strides = array<i32>} : memref<1x4x8x8xf32, #tpu.memory_space<vmem>>, vector<1x1x8x8xf32>,
    %64 = vector.extract_strided_slice %31 {offsets = [0, 80], sizes = [8, 8], strides = [1, 1]} : vector<8x96xf32> to vector<8x8xf32>
    %c0_43 = arith.constant 0 : index
    %c2_44 = arith.constant 2 : index
    %c0_45 = arith.constant 0 : index
    %c0_46 = arith.constant 0 : index
    %65 = vector.load %arg8[%c0_43, %c2_44, %c0_45, %c0_46] : memref<1x4x8x8xf32, #tpu.memory_space<vmem>>, vector<1x1x8x8xf32>
    %66 = vector.shape_cast %65 : vector<1x1x8x8xf32> to vector<8x8xf32>
    %67 = vector.shape_cast %64 : vector<8x8xf32> to vector<1x1x8x8xf32>
    tpu.vector_store %arg8[%c0_43, %c2_44, %c0_45, %c0_46], %67 {strides = array<i32>} : memref<1x4x8x8xf32, #tpu.memory_space<vmem>>, vector<1x1x8x8xf32>,
    %68 = vector.extract_strided_slice %31 {offsets = [0, 24], sizes = [8, 8], strides = [1, 1]} : vector<8x96xf32> to vector<8x8xf32>
    %c0_47 = arith.constant 0 : index
    %c3 = arith.constant 3 : index
    %c0_48 = arith.constant 0 : index
    %c0_49 = arith.constant 0 : index
    %69 = vector.load %arg6[%c0_47, %c3, %c0_48, %c0_49] : memref<1x4x8x8xf32, #tpu.memory_space<vmem>>, vector<1x1x8x8xf32>
    %70 = vector.shape_cast %69 : vector<1x1x8x8xf32> to vector<8x8xf32>
    %71 = vector.shape_cast %68 : vector<8x8xf32> to vector<1x1x8x8xf32>
    tpu.vector_store %arg6[%c0_47, %c3, %c0_48, %c0_49], %71 {strides = array<i32>} : memref<1x4x8x8xf32, #tpu.memory_space<vmem>>, vector<1x1x8x8xf32>,
    %72 = vector.extract_strided_slice %31 {offsets = [0, 56], sizes = [8, 8], strides = [1, 1]} : vector<8x96xf32> to vector<8x8xf32>
    %c0_50 = arith.constant 0 : index
    %c3_51 = arith.constant 3 : index
    %c0_52 = arith.constant 0 : index
    %c0_53 = arith.constant 0 : index
    %73 = vector.load %arg7[%c0_50, %c3_51, %c0_52, %c0_53] : memref<1x4x8x8xf32, #tpu.memory_space<vmem>>, vector<1x1x8x8xf32>
    %74 = vector.shape_cast %73 : vector<1x1x8x8xf32> to vector<8x8xf32>
    %75 = vector.shape_cast %72 : vector<8x8xf32> to vector<1x1x8x8xf32>
    tpu.vector_store %arg7[%c0_50, %c3_51, %c0_52, %c0_53], %75 {strides = array<i32>} : memref<1x4x8x8xf32, #tpu.memory_space<vmem>>, vector<1x1x8x8xf32>,
    %76 = vector.extract_strided_slice %31 {offsets = [0, 88], sizes = [8, 8], strides = [1, 1]} : vector<8x96xf32> to vector<8x8xf32>
    %c0_54 = arith.constant 0 : index
    %c3_55 = arith.constant 3 : index
    %c0_56 = arith.constant 0 : index
    %c0_57 = arith.constant 0 : index
    %77 = vector.load %arg8[%c0_54, %c3_55, %c0_56, %c0_57] : memref<1x4x8x8xf32, #tpu.memory_space<vmem>>, vector<1x1x8x8xf32>
    %78 = vector.shape_cast %77 : vector<1x1x8x8xf32> to vector<8x8xf32>
    %79 = vector.shape_cast %76 : vector<8x8xf32> to vector<1x1x8x8xf32>
    tpu.vector_store %arg8[%c0_54, %c3_55, %c0_56, %c0_57], %79 {strides = array<i32>} : memref<1x4x8x8xf32, #tpu.memory_space<vmem>>, vector<1x1x8x8xf32>,
    return
  }
  func.func @transform_0(%arg0: i32, %arg1: i32) -> (i32, i32, i32) {
    %c0_i32 = arith.constant 0 : i32
    %c0_i32_0 = arith.constant 0 : i32
    return %arg0, %arg1, %c0_i32 : i32, i32, i32
  }
  func.func @transform_1(%arg0: i32, %arg1: i32) -> (i32, i32) {
    %c0_i32 = arith.constant 0 : i32
    %c0_i32_0 = arith.constant 0 : i32
    %c0_i32_1 = arith.constant 0 : i32
    return %c0_i32, %c0_i32_0 : i32, i32
  }
  func.func @transform_2(%arg0: i32, %arg1: i32) -> (i32, i32) {
    %c0_i32 = arith.constant 0 : i32
    %c0_i32_0 = arith.constant 0 : i32
    %c0_i32_1 = arith.constant 0 : i32
    return %c0_i32, %c0_i32_0 : i32, i32
  }
  func.func @transform_3(%arg0: i32, %arg1: i32) -> (i32, i32) {
    %c0_i32 = arith.constant 0 : i32
    %c0_i32_0 = arith.constant 0 : i32
    %c0_i32_1 = arith.constant 0 : i32
    return %c0_i32, %c0_i32_0 : i32, i32
  }
  func.func @transform_4(%arg0: i32, %arg1: i32) -> (i32, i32, i32, i32) {
    %c0_i32 = arith.constant 0 : i32
    %c0_i32_0 = arith.constant 0 : i32
    %c0_i32_1 = arith.constant 0 : i32
    return %arg0, %c0_i32, %arg1, %c0_i32_0 : i32, i32, i32, i32
  }
  func.func @transform_5(%arg0: i32, %arg1: i32) -> (i32, i32, i32, i32) {
    %c0_i32 = arith.constant 0 : i32
    %c0_i32_0 = arith.constant 0 : i32
    %c0_i32_1 = arith.constant 0 : i32
    return %arg0, %c0_i32, %arg1, %c0_i32_0 : i32, i32, i32, i32
  }
  func.func @transform_6(%arg0: i32, %arg1: i32) -> (i32, i32, i32, i32) {
    %c0_i32 = arith.constant 0 : i32
    %c0_i32_0 = arith.constant 0 : i32
    %c0_i32_1 = arith.constant 0 : i32
    return %arg0, %c0_i32, %arg1, %c0_i32_0 : i32, i32, i32, i32
  }
}

</mosaic_0001>

<llo_original>
// kernel: tpu_custom_call.1
$region0: #{tpu_custom_call.1}
  #allocation0 [shape = 'u32[]', space=smem, size = 0x4, offset = 0x4, fixed_abs, tag = 'smem constant byte address 0x4 - core index']
  #allocation1 [shape = 'u32[144,128]{1,0:T(1,128)}', space=vmem, size = 0x12000, scoped, tag = 'internal scratch']
  %s0 = inlined_call_operand.hbm [shape: f32[2,16,32], index: 0, kind: input, shape index: {}]
  %s1 = inlined_call_operand.hbm [shape: f32[32,96], index: 1, kind: input, shape index: {}]
  %s2 = inlined_call_operand.vmem [shape: f32[1,32], index: 2, kind: input, shape index: {}]
  %s3 = inlined_call_operand.vmem [shape: f32[1,32], index: 3, kind: input, shape index: {}]
  %s4 = inlined_call_operand.vmem [shape: f32[2,4,16,8], index: 4, kind: output, shape index: {0}]
  %s5 = inlined_call_operand.vmem [shape: f32[2,4,16,8], index: 5, kind: output, shape index: {1}]
  %s6 = inlined_call_operand.vmem [shape: f32[2,4,16,8], index: 6, kind: output, shape index: {2}]
  %7 = xla_tuple %s4, %s5, %s6
  %s8 = sld [smem:[#allocation0]]
  $region175: #{tpu_custom_call.1} parent=0
    _
  %s10 = ssub.s32 1, %s8
  %s11 = scalar_select 0, %s10, %s8
  $region1: #{tpu_custom_call.1} parent=0
    #allocation2 [shape = 'u8[8192]{0}', space=vmem, size = 0x2000, scoped, tag = 'input window, operand 0']
    #allocation3 [shape = 's32[2]{0}', space=sflag, size = 0x8, scoped, tag = 'scoped memory for tpu_custom_call.1']
    #allocation4 [shape = 'u8[16384]{0}', space=vmem, size = 0x4000, scoped, tag = 'input window, operand 1, single buffered']
    #allocation5 [shape = 's32[1]{0}', space=sflag, size = 0x4, scoped, tag = 'scoped memory for tpu_custom_call.1']
    #allocation6 [shape = 'u8[32768]{0}', space=vmem, size = 0x8000, scoped, tag = 'output window, operand 0']
    #allocation7 [shape = 'u8[32768]{0}', space=vmem, size = 0x8000, scoped, tag = 'output window, operand 1']
    #allocation8 [shape = 'u8[32768]{0}', space=vmem, size = 0x8000, scoped, tag = 'output window, operand 2']
    %12 = vsyncpa [#allocation3], 0
    %s13 = scalar_lea.sflag [#allocation3], 1
    %14 = vsyncpa %s13, 0
    %15 = vsyncpa [#allocation5], 0
    loop: start=0, step=1, limit=6
    $region2: #{tpu_custom_call.1} parent=1 // loop_pre_header
      _
    $region3: #{tpu_custom_call.1} parent=1 // loop_header
      %s17 = sphi 0, %s21
      %p18 = scmp.ge.s32.totalorder %s17, 6
      %s24 = sphi 0, %s36
      %s25 = sphi 0, %s32
      %s26 = sphi 0, %s24
      %s27 = sphi 0, %s25
      %s28 = sphi 0, %s26
      %s29 = sphi 0, %s27
      %s41 = sphi 0, %s43
      %s44 = sphi 0, %s41
      %s45 = sphi 0, %s44
      %s61 = sphi 0, %s45
      %s65 = sphi 0, %s65
      %s67 = sphi 0, %s65
      %s68 = sphi 0, %s67
      %s82 = sphi 0, %s68
      %s86 = sphi 0, %s86
      %s88 = sphi 0, %s86
      %s89 = sphi 0, %s88
      %s103 = sphi 0, %s89
      %s107 = sphi 0, %s107
      %s109 = sphi 0, %s107
      %s110 = sphi 0, %s109
      %s124 = sphi 0, %s110
      %s132 = sphi 0, %s134
      %s135 = sphi 0, %s132
      %s136 = sphi 0, %s135
      %s152 = sphi 0, %s136
      %s160 = sphi 0, %s162
      %s163 = sphi 0, %s160
      %s164 = sphi 0, %s163
      %s180 = sphi 0, %s164
      %s188 = sphi 0, %s190
      %s191 = sphi 0, %s188
      %s192 = sphi 0, %s191
      %s208 = sphi 0, %s192
    $region4: #{tpu_custom_call.1} parent=1 // loop_header_branch
      %20 = sbr.rel (%p18) target = $region8
    $region5: #{tpu_custom_call.1} parent=1 // loop_body
      %s22 = ssub.s32 %s17, 1
      %s23 = ssub.s32 %s17, 2
      %s30 = sadd.s32 1, %s25
      %p31 = scmp.ge.s32.totalorder %s30, 2
      %s32 = scalar_select %p31, 0, %s30
      %s33 = sadd.s32 1, %s24
      %s34 = scalar_select %p31, %s33, %s24
      %p35 = scmp.ge.s32.totalorder %s34, 2
      %s36 = scalar_select %p35, 0, %s34
      %s37 = ssub.s32 %s24, %s36
      %s38 = ssub.s32 %s25, %s32
      %s39 = sor.u32 %s37, %s38
      %p40 = scmp.eq.s32.totalorder %s39, 0
      %s42 = sadd.s32 %s41, 1
      %s43 = scalar_select %p40, %s41, %s42
      %p46 = pneg %p40
      %p47 = scmp.eq.s32.totalorder %s17, 3
      %p48 = por %p46, %p47
      %p49 = scmp.ne.s32.totalorder %s41, %s44
      %p50 = scmp.eq.s32.totalorder %s17, 0
      %p51 = por %p49, %p50
      %p52 = scmp.ne.s32.totalorder %s41, %s44
      %p53 = scmp.eq.s32.totalorder %s22, 3
      %p54 = por %p52, %p53
      %p55 = scmp.ne.s32.totalorder %s44, %s45
      %p56 = scmp.eq.s32.totalorder %s22, 0
      %p57 = por %p55, %p56
      %p58 = scmp.ne.s32.totalorder %s44, %s45
      %p59 = scmp.eq.s32.totalorder %s23, 3
      %p60 = por %p58, %p59
      %p62 = scmp.ne.s32.totalorder %s45, %s61
      %p63 = scmp.eq.s32.totalorder %s23, 0
      %p64 = por %p62, %p63
      %s66 = sadd.s32 %s65, 1
      %p69 = scmp.eq.s32.totalorder %s17, 3
      %p70 = scmp.ne.s32.totalorder %s65, %s67
      %p71 = scmp.eq.s32.totalorder %s17, 0
      %p72 = por %p70, %p71
      %p73 = scmp.ne.s32.totalorder %s65, %s67
      %p74 = scmp.eq.s32.totalorder %s22, 3
      %p75 = por %p73, %p74
      %p76 = scmp.ne.s32.totalorder %s67, %s68
      %p77 = scmp.eq.s32.totalorder %s22, 0
      %p78 = por %p76, %p77
      %p79 = scmp.ne.s32.totalorder %s67, %s68
      %p80 = scmp.eq.s32.totalorder %s23, 3
      %p81 = por %p79, %p80
      %p83 = scmp.ne.s32.totalorder %s68, %s82
      %p84 = scmp.eq.s32.totalorder %s23, 0
      %p85 = por %p83, %p84
      %s87 = sadd.s32 %s86, 1
      %p90 = scmp.eq.s32.totalorder %s17, 3
      %p91 = scmp.ne.s32.totalorder %s86, %s88
      %p92 = scmp.eq.s32.totalorder %s17, 0
      %p93 = por %p91, %p92
      %p94 = scmp.ne.s32.totalorder %s86, %s88
      %p95 = scmp.eq.s32.totalorder %s22, 3
      %p96 = por %p94, %p95
      %p97 = scmp.ne.s32.totalorder %s88, %s89
      %p98 = scmp.eq.s32.totalorder %s22, 0
      %p99 = por %p97, %p98
      %p100 = scmp.ne.s32.totalorder %s88, %s89
      %p101 = scmp.eq.s32.totalorder %s23, 3
      %p102 = por %p100, %p101
      %p104 = scmp.ne.s32.totalorder %s89, %s103
      %p105 = scmp.eq.s32.totalorder %s23, 0
      %p106 = por %p104, %p105
      %s108 = sadd.s32 %s107, 1
      %p111 = scmp.eq.s32.totalorder %s17, 3
      %p112 = scmp.ne.s32.totalorder %s107, %s109
      %p113 = scmp.eq.s32.totalorder %s17, 0
      %p114 = por %p112, %p113
      %p115 = scmp.ne.s32.totalorder %s107, %s109
      %p116 = scmp.eq.s32.totalorder %s22, 3
      %p117 = por %p115, %p116
      %p118 = scmp.ne.s32.totalorder %s109, %s110
      %p119 = scmp.eq.s32.totalorder %s22, 0
      %p120 = por %p118, %p119
      %p121 = scmp.ne.s32.totalorder %s109, %s110
      %p122 = scmp.eq.s32.totalorder %s23, 3
      %p123 = por %p121, %p122
      %p125 = scmp.ne.s32.totalorder %s110, %s124
      %p126 = scmp.eq.s32.totalorder %s23, 0
      %p127 = por %p125, %p126
      %s128 = ssub.s32 %s24, %s36
      %s129 = ssub.s32 %s25, %s32
      %s130 = sor.u32 %s128, %s129
      %p131 = scmp.eq.s32.totalorder %s130, 0
      %s133 = sadd.s32 %s132, 1
      %s134 = scalar_select %p131, %s132, %s133
      %p137 = pneg %p131
      %p138 = scmp.eq.s32.totalorder %s17, 3
      %p139 = por %p137, %p138
      %p140 = scmp.ne.s32.totalorder %s132, %s135
      %p141 = scmp.eq.s32.totalorder %s17, 0
      %p142 = por %p140, %p141
      %p143 = scmp.ne.s32.totalorder %s132, %s135
      %p144 = scmp.eq.s32.totalorder %s22, 3
      %p145 = por %p143, %p144
      %p146 = scmp.ne.s32.totalorder %s135, %s136
      %p147 = scmp.eq.s32.totalorder %s22, 0
      %p148 = por %p146, %p147
      %p149 = scmp.ne.s32.totalorder %s135, %s136
      %p150 = scmp.eq.s32.totalorder %s23, 3
      %p151 = por %p149, %p150
      %p153 = scmp.ne.s32.totalorder %s136, %s152
      %p154 = scmp.eq.s32.totalorder %s23, 0
      %p155 = por %p153, %p154
      %s156 = ssub.s32 %s24, %s36
      %s157 = ssub.s32 %s25, %s32
      %s158 = sor.u32 %s156, %s157
      %p159 = scmp.eq.s32.totalorder %s158, 0
      %s161 = sadd.s32 %s160, 1
      %s162 = scalar_select %p159, %s160, %s161
      %p165 = pneg %p159
      %p166 = scmp.eq.s32.totalorder %s17, 3
      %p167 = por %p165, %p166
      %p168 = scmp.ne.s32.totalorder %s160, %s163
      %p169 = scmp.eq.s32.totalorder %s17, 0
      %p170 = por %p168, %p169
      %p171 = scmp.ne.s32.totalorder %s160, %s163
      %p172 = scmp.eq.s32.totalorder %s22, 3
      %p173 = por %p171, %p172
      %p174 = scmp.ne.s32.totalorder %s163, %s164
      %p175 = scmp.eq.s32.totalorder %s22, 0
      %p176 = por %p174, %p175
      %p177 = scmp.ne.s32.totalorder %s163, %s164
      %p178 = scmp.eq.s32.totalorder %s23, 3
      %p179 = por %p177, %p178
      %p181 = scmp.ne.s32.totalorder %s164, %s180
      %p182 = scmp.eq.s32.totalorder %s23, 0
      %p183 = por %p181, %p182
      %s184 = ssub.s32 %s24, %s36
      %s185 = ssub.s32 %s25, %s32
      %s186 = sor.u32 %s184, %s185
      %p187 = scmp.eq.s32.totalorder %s186, 0
      %s189 = sadd.s32 %s188, 1
      %s190 = scalar_select %p187, %s188, %s189
      %p193 = pneg %p187
      %p194 = scmp.eq.s32.totalorder %s17, 3
      %p195 = por %p193, %p194
      %p196 = scmp.ne.s32.totalorder %s188, %s191
      %p197 = scmp.eq.s32.totalorder %s17, 0
      %p198 = por %p196, %p197
      %p199 = scmp.ne.s32.totalorder %s188, %s191
      %p200 = scmp.eq.s32.totalorder %s22, 3
      %p201 = por %p199, %p200
      %p202 = scmp.ne.s32.totalorder %s191, %s192
      %p203 = scmp.eq.s32.totalorder %s22, 0
      %p204 = por %p202, %p203
      %p205 = scmp.ne.s32.totalorder %s191, %s192
      %p206 = scmp.eq.s32.totalorder %s23, 3
      %p207 = por %p205, %p206
      %p209 = scmp.ne.s32.totalorder %s192, %s208
      %p210 = scmp.eq.s32.totalorder %s23, 0
      %p211 = por %p209, %p210
      %p212 = scmp.le.s32.totalorder 1, %s17
      %p213 = scmp.lt.s32.totalorder %s17, 5
      %p214 = pnand %p212, %p213
      %p215 = pneg %p214
      // Predicated region
      $region9: #{tpu_custom_call.1} parent=5 // pred_check
        _
      $region10: #{tpu_custom_call.1} parent=5 // pred_check_branch
        %217 = sbr.rel (%p214) target = $region12
      $region11: #{tpu_custom_call.1} parent=5 // pred_region
        %s218 = ssub.s32 %s17, 1
        // Predicated region
        $region13: #{tpu_custom_call.1} parent=11 // pred_check
          %p219 = pneg %p78
        $region14: #{tpu_custom_call.1} parent=11 // pred_check_branch
          %221 = sbr.rel (%p219) target = $region16
        $region15: #{tpu_custom_call.1} parent=11 // pred_region
          %s223 = ssub.s32 512, 512
          %224 = vsyncadd [#allocation5], %s223
          %s225 = sshll.u32 [#allocation4], 4
          %s226 = int_to_ptr.vmem [resolvable:$true] %s225
          %231 = dma.hbm_to_vmem [thread:$0]  %s1, 512, %s226, [#allocation5], 128, 128, 8
        $region16: #{tpu_custom_call.1} parent=11 // pred_fallthru
          _
        // Predicated region
        $region17: #{tpu_custom_call.1} parent=11 // pred_check
          %p232 = pneg %p99
        $region18: #{tpu_custom_call.1} parent=11 // pred_check_branch
          %234 = sbr.rel (%p232) target = $region20
        $region19: #{tpu_custom_call.1} parent=11 // pred_region
          _
        $region20: #{tpu_custom_call.1} parent=11 // pred_fallthru
          _
        // Predicated region
        $region21: #{tpu_custom_call.1} parent=11 // pred_check
          %p235 = pneg %p120
        $region22: #{tpu_custom_call.1} parent=11 // pred_check_branch
          %237 = sbr.rel (%p235) target = $region24
        $region23: #{tpu_custom_call.1} parent=11 // pred_region
          _
        $region24: #{tpu_custom_call.1} parent=11 // pred_fallthru
          _
      $region12: #{tpu_custom_call.1} parent=5 // pred_fallthru
        _
      %p238 = scmp.lt.s32.totalorder %s17, 4
      // Predicated region
      $region25: #{tpu_custom_call.1} parent=5 // pred_check
        %p239 = pneg %p238
      $region26: #{tpu_custom_call.1} parent=5 // pred_check_branch
        %241 = sbr.rel (%p239) target = $region28
      $region27: #{tpu_custom_call.1} parent=5 // pred_region
        // Predicated region
        $region29: #{tpu_custom_call.1} parent=27 // pred_check
          %p242 = pneg %p51
        $region30: #{tpu_custom_call.1} parent=27 // pred_check_branch
          %244 = sbr.rel (%p242) target = $region32
        $region31: #{tpu_custom_call.1} parent=27 // pred_region
          %s245 = sand.u32 %s41, 1
          %s246 = scalar_lea.sflag [#allocation3], %s245
          %s247 = sand.u32 %s41, 1
          %s248 = smul.addr %s247, 8
          %s249 = scalar_lea.vmem [#allocation2], %s248
          %s251 = ssub.s32 128, 128
          %252 = vsyncadd %s246, %s251
          %s253 = smul.addr %s24, 2
          %s254 = sadd.s32 %s25, %s253
          %s255 = smul.addr %s254, 128
          %s256 = scalar_lea.hbm %s0, %s255
          %s258 = sshll.u32 %s249, 4
          %s259 = int_to_ptr.vmem [resolvable:$true] %s258
          %261 = dma.hbm_to_vmem [thread:$0]  %s256, 128, %s259, %s246
        $region32: #{tpu_custom_call.1} parent=27 // pred_fallthru
          _
      $region28: #{tpu_custom_call.1} parent=5 // pred_fallthru
        _
      %p262 = scmp.le.s32.totalorder 1, %s17
      %p263 = scmp.lt.s32.totalorder %s17, 5
      %p264 = pnand %p262, %p263
      %p265 = pneg %p264
      // Predicated region
      $region33: #{tpu_custom_call.1} parent=5 // pred_check
        _
      $region34: #{tpu_custom_call.1} parent=5 // pred_check_branch
        %267 = sbr.rel (%p264) target = $region36
      $region35: #{tpu_custom_call.1} parent=5 // pred_region
        %s268 = ssub.s32 %s17, 1
        %s269 = sand.u32 %s44, 1
        %s270 = scalar_lea.sflag [#allocation3], %s269
        %s271 = sand.u32 %s44, 1
        %s272 = smul.addr %s271, 8
        %s273 = scalar_lea.vmem [#allocation2], %s272
        // Predicated region
        $region37: #{tpu_custom_call.1} parent=35 // pred_check
          %p274 = pneg %p57
        $region38: #{tpu_custom_call.1} parent=35 // pred_check_branch
          %276 = sbr.rel (%p274) target = $region40
        $region39: #{tpu_custom_call.1} parent=35 // pred_region
          %277 = dma.done %s270, 128
        $region40: #{tpu_custom_call.1} parent=35 // pred_fallthru
          _
        // Predicated region
        $region41: #{tpu_custom_call.1} parent=35 // pred_check
          %p278 = pneg %p78
        $region42: #{tpu_custom_call.1} parent=35 // pred_check_branch
          %280 = sbr.rel (%p278) target = $region44
        $region43: #{tpu_custom_call.1} parent=35 // pred_region
          %281 = dma.done [#allocation5], 512
        $region44: #{tpu_custom_call.1} parent=35 // pred_fallthru
          _
        %s282 = sand.u32 %s44, 1
        %s283 = scalar_lea.sflag [#allocation3], %s282
        %s284 = sand.u32 %s44, 1
        %s285 = smul.addr %s284, 8
        %s286 = scalar_lea.vmem [#allocation2], %s285
        %p287 = pneg %p57
        %p288 = pneg %p54
        %p289 = pneg %p78
        %p290 = pneg %p75
        %p291 = pneg %p99
        %p292 = pneg %p96
        %p293 = pneg %p120
        %p294 = pneg %p117
        %p295 = pneg %p148
        %p296 = pneg %p145
        %s297 = sand.u32 %s135, 1
        %s298 = sand.u32 %s135, 1
        %s299 = smul.addr %s298, 32
        %s300 = scalar_lea.vmem [#allocation6], %s299
        %p301 = pneg %p176
        %p302 = pneg %p173
        %s303 = sand.u32 %s163, 1
        %s304 = sand.u32 %s163, 1
        %s305 = smul.addr %s304, 32
        %s306 = scalar_lea.vmem [#allocation7], %s305
        %p307 = pneg %p204
        %p308 = pneg %p201
        %s309 = sand.u32 %s191, 1
        %s310 = sand.u32 %s191, 1
        %s311 = smul.addr %s310, 32
        %s312 = scalar_lea.vmem [#allocation8], %s311
        %v313 = vld [vmem:[%s273] sm:$0xff]
        %v314 = vld [vmem:[%s2] sm:$0x1]
        %v315 = vld [vmem:[%s3] sm:$0x1]
        %vm316 = vcmask 261120
        %v317 = vsel %vm316, %v313, 0.0
        %318 = vadd.xlane.f32.xlu0 %v317
        %v319 = vpop.xlane.xlu0 %318
        %v320 = vrcp.pop 32.0
        %v321 = vmul.f32 %v319, %v320
        %v322 = vsub.f32 %v313, %v321
        %v323 = vmul.f32 %v322, %v322
        %v324 = vsel %vm316, %v323, 0.0
        %325 = vadd.xlane.f32.xlu0 %v324
        %v326 = vpop.xlane.xlu0 %325
        %v327 = vmul.f32 %v326, %v320
        %v328 = vadd.f32 %v327, 1e-05
        %v329 = vrsqrt.pop %v328
        %v330 = vmul.f32 %v322, %v329
        %v332 = vlaneseq
        %v333 = vshrl.u32 %v332, 7
        %v334 = vsub.s32 0, %v333
        %v335 = vrot.slane %v314, %v334
        %v337 = vmul.f32 %v330, %v335
        %v339 = vlaneseq
        %v340 = vshrl.u32 %v339, 7
        %v341 = vsub.s32 0, %v340
        %v342 = vrot.slane %v315, %v341
        %v344 = vadd.f32 %v337, %v342
        %v345 = vld [vmem:[#allocation4] sm:$0xff]
        %v346 = vld [vmem:[#allocation4 + $0x8] sm:$0xff]
        %v347 = vld [vmem:[#allocation4 + $0x10] sm:$0xff]
        %v348 = vld [vmem:[#allocation4 + $0x18] sm:$0xff]
        %v350 = vsel %vm316, %v344, 0
        %352 = vmatprep.subr.mxu0 0.0
        %353 = vmatpush1.msra.mxu0 %v345
        %354 = vmatprep.subr.mxu0 0.0
        %355 = vmatpush1.msra.mxu0 %v346
        %356 = vmatprep.subr.mxu0 0.0
        %357 = vmatpush1.msra.mxu0 %v347
        %358 = vmatprep.subr.mxu0 0.0
        %359 = vmatpush1.msra.mxu0 %v348
        %360 = vmatprep.subr.mxu0 0.0
        %361 = vmatpush1.msra.mxu0 0.0
        %362 = vmatprep.subr.mxu0 0.0
        %363 = vmatpush1.msra.mxu0 0.0
        %364 = vmatprep.subr.mxu0 0.0
        %365 = vmatpush1.msra.mxu0 0.0
        %366 = vmatprep.subr.mxu0 0.0
        %367 = vmatpush1.msra.mxu0 0.0
        %368 = vmatprep.subr.mxu0 0.0
        %369 = vmatpush1.msra.mxu0 0.0
        %370 = vmatprep.subr.mxu0 0.0
        %371 = vmatpush1.msra.mxu0 0.0
        %372 = vmatprep.subr.mxu0 0.0
        %373 = vmatpush1.msra.mxu0 0.0
        %374 = vmatprep.subr.mxu0 0.0
        %375 = vmatpush1.msra.mxu0 0.0
        %376 = vmatprep.subr.mxu0 0.0
        %377 = vmatpush1.msra.mxu0 0.0
        %378 = vmatprep.subr.mxu0 0.0
        %379 = vmatpush1.msra.mxu0 0.0
        %380 = vmatprep.subr.mxu0 0.0
        %381 = vmatpush1.msra.mxu0 0.0
        %382 = vmatprep.subr.mxu0 0.0
        %383 = vmatpush1.msra.mxu0 0.0
        %384 = vmatprep.subr.mxu0 0.0
        %385 = vmatpush1.msra.mxu0 0.0
        %386 = vmatprep.subr.mxu0 0.0
        %387 = vmatpush1.msra.mxu0 0.0
        %388 = vmatprep.subr.mxu0 0.0
        %389 = vmatpush1.msra.mxu0 0.0
        %390 = vmatprep.subr.mxu0 0.0
        %391 = vmatpush1.msra.mxu0 0.0
        %392 = vmatprep.subr.mxu0 0.0
        %393 = vmatpush1.msra.mxu0 0.0
        %394 = vmatprep.subr.mxu0 0.0
        %395 = vmatpush1.msra.mxu0 0.0
        %396 = vmatprep.subr.mxu0 0.0
        %397 = vmatpush1.msra.mxu0 0.0
        %398 = vmatprep.subr.mxu0 0.0
        %399 = vmatpush1.msra.mxu0 0.0
        %400 = vmatprep.subr.mxu0 0.0
        %401 = vmatpush1.msra.mxu0 0.0
        %402 = vmatprep.subr.mxu0 0.0
        %403 = vmatpush1.msra.mxu0 0.0
        %404 = vmatprep.subr.mxu0 0.0
        %405 = vmatpush1.msra.mxu0 0.0
        %406 = vmatprep.subr.mxu0 0.0
        %407 = vmatpush1.msra.mxu0 0.0
        %408 = vmatprep.subr.mxu0 0.0
        %409 = vmatpush1.msra.mxu0 0.0
        %410 = vmatprep.subr.mxu0 0.0
        %411 = vmatpush1.msra.mxu0 0.0
        %412 = vmatprep.subr.mxu0 0.0
        %413 = vmatpush1.msra.mxu0 0.0
        %414 = vmatprep.subr.mxu0 0.0
        %415 = vmatpush1.msra.mxu0 0.0
        %416 = vmatprep.mubr.f32.mxu0 0.0
        %417 = vmatmul.mubr.f32.gmra.mrb[0].mxu0 %v350
        %v418 = vpop.f32.mrb[0].mxu0
        %v419 = vadd.f32 0.0, %v418
        %v420 = vpop.f32.mrb[0].mxu0
        %421 = vdwg.mxu0
        %vm422 = vcmask 64512
        %423 = vst.msk [vmem:[%s300] sm:$0xff] %vm422, %v419
        %425 = vrot.lane.b32.xlu0 %v419, 96
        %v426 = vpop.permute.xlu0 %425
        %428 = vst.msk [vmem:[%s306] sm:$0xff] %vm422, %v426
        %429 = vrot.lane.b32.xlu0 %v419, 64
        %v430 = vpop.permute.xlu0 %429
        %432 = vst.msk [vmem:[%s312] sm:$0xff] %vm422, %v430
        %433 = vrot.lane.b32.xlu0 %v419, 120
        %v434 = vpop.permute.xlu0 %433
        %s436 = scalar_lea.vmem %s300, 8 [#allocation6]
        %437 = vst.msk [vmem:[%s436] sm:$0xff] %vm422, %v434
        %438 = vrot.lane.b32.xlu0 %v419, 88
        %v439 = vpop.permute.xlu0 %438
        %s441 = scalar_lea.vmem %s306, 8 [#allocation7]
        %442 = vst.msk [vmem:[%s441] sm:$0xff] %vm422, %v439
        %443 = vrot.lane.b32.xlu0 %v419, 56
        %v444 = vpop.permute.xlu0 %443
        %s446 = scalar_lea.vmem %s312, 8 [#allocation8]
        %447 = vst.msk [vmem:[%s446] sm:$0xff] %vm422, %v444
        %448 = vrot.lane.b32.xlu0 %v419, 112
        %v449 = vpop.permute.xlu0 %448
        %s451 = scalar_lea.vmem %s300, 16 [#allocation6]
        %452 = vst.msk [vmem:[%s451] sm:$0xff] %vm422, %v449
        %453 = vrot.lane.b32.xlu0 %v419, 80
        %v454 = vpop.permute.xlu0 %453
        %s456 = scalar_lea.vmem %s306, 16 [#allocation7]
        %457 = vst.msk [vmem:[%s456] sm:$0xff] %vm422, %v454
        %458 = vrot.lane.b32.xlu0 %v419, 48
        %v459 = vpop.permute.xlu0 %458
        %s461 = scalar_lea.vmem %s312, 16 [#allocation8]
        %462 = vst.msk [vmem:[%s461] sm:$0xff] %vm422, %v459
        %463 = vrot.lane.b32.xlu0 %v419, 104
        %v464 = vpop.permute.xlu0 %463
        %s466 = scalar_lea.vmem %s300, 24 [#allocation6]
        %467 = vst.msk [vmem:[%s466] sm:$0xff] %vm422, %v464
        %468 = vrot.lane.b32.xlu0 %v419, 72
        %v469 = vpop.permute.xlu0 %468
        %s471 = scalar_lea.vmem %s306, 24 [#allocation7]
        %472 = vst.msk [vmem:[%s471] sm:$0xff] %vm422, %v469
        %473 = vrot.lane.b32.xlu0 %v419, 40
        %v474 = vpop.permute.xlu0 %473
        %s476 = scalar_lea.vmem %s312, 24 [#allocation8]
        %477 = vst.msk [vmem:[%s476] sm:$0xff] %vm422, %v474
        %s478 = sand.u32 %s135, 1
        %s479 = sand.u32 %s135, 1
        %s480 = smul.addr %s479, 32
        %s481 = scalar_lea.vmem [#allocation6], %s480
        %s482 = sand.u32 %s163, 1
        %s483 = sand.u32 %s163, 1
        %s484 = smul.addr %s483, 32
        %s485 = scalar_lea.vmem [#allocation7], %s484
        %s486 = sand.u32 %s191, 1
        %s487 = sand.u32 %s191, 1
        %s488 = smul.addr %s487, 32
        %s489 = scalar_lea.vmem [#allocation8], %s488
        // Predicated region
        $region45: #{tpu_custom_call.1} parent=35 // pred_check
          %p490 = pneg %p145
        $region46: #{tpu_custom_call.1} parent=35 // pred_check_branch
          %492 = sbr.rel (%p490) target = $region48
        $region47: #{tpu_custom_call.1} parent=35 // pred_region
          %s493 = smul.addr %s26, 8
          %s494 = sadd.s32 %s27, %s493
          %s495 = smul.addr %s494, 8
          %s496 = scalar_lea.vmem %s4, %s495
          // Predicated region
          $region49: #{tpu_custom_call.1} parent=47 // pred_check
            _
          $region50: #{tpu_custom_call.1} parent=47 // pred_check_branch
            %498 = sbr.rel (0) target = $region52
          $region51: #{tpu_custom_call.1} parent=47 // pred_region
            // Predicated region
            $region53: #{tpu_custom_call.1} parent=51 // pred_check
              _
            $region54: #{tpu_custom_call.1} parent=51 // pred_check_branch
              %500 = sbr.rel (0) target = $region56
            $region55: #{tpu_custom_call.1} parent=51 // pred_region
              // Predicated region
              $region68: #{tpu_custom_call.1} parent=55 // pred_check
                _
              $region69: #{tpu_custom_call.1} parent=55 // pred_check_branch
                %521 = sbr.rel (0) target = $region71
              $region70: #{tpu_custom_call.1} parent=55 // pred_region
                loop: start=0, step=1, limit=1
                $region72: #{tpu_custom_call.1} parent=70 // loop_pre_header
                  _
                $region73: #{tpu_custom_call.1} parent=70 // loop_header
                  %s523 = sphi 0, %s527
                  %p524 = scmp.ge.s32.totalorder %s523, 1
                  %s528 = sphi %s481, %s481
                  %s529 = sphi %s496, %s496
                $region74: #{tpu_custom_call.1} parent=70 // loop_header_branch
                  %526 = sbr.rel (%p524) target = $region78
                $region75: #{tpu_custom_call.1} parent=70 // loop_body
                  %v530 = vld [vmem:[%s528] sm:$0xff]
                  %531 = vst [vmem:[%s529] sm:$0xff] %v530
                  %v532 = vld [vmem:[%s528 + $0x8] sm:$0xff]
                  %533 = vst [vmem:[%s529 + $0x10] sm:$0xff] %v532
                  %v534 = vld [vmem:[%s528 + $0x10] sm:$0xff]
                  %535 = vst [vmem:[%s529 + $0x20] sm:$0xff] %v534
                  %v536 = vld [vmem:[%s528 + $0x18] sm:$0xff]
                  %537 = vst [vmem:[%s529 + $0x30] sm:$0xff] %v536
                $region76: #{tpu_custom_call.1} parent=70 // loop_footer
                  %s527 = sadd.s32 1, %s523
                $region77: #{tpu_custom_call.1} parent=70 // loop_footer_branch
                  %522 = sbr.rel target = $region73
                $region78: #{tpu_custom_call.1} parent=70 // loop_exit
                  _
              $region71: #{tpu_custom_call.1} parent=55 // pred_fallthru
                _
              // Predicated region
              $region79: #{tpu_custom_call.1} parent=55 // pred_check
                _
              $region80: #{tpu_custom_call.1} parent=55 // pred_check_branch
                %539 = sbr.rel target = $region82
              $region81: #{tpu_custom_call.1} parent=55 // pred_region
                _
              $region82: #{tpu_custom_call.1} parent=55 // pred_fallthru
                _
            $region56: #{tpu_custom_call.1} parent=51 // pred_fallthru
              _
            // Predicated region
            $region57: #{tpu_custom_call.1} parent=51 // pred_check
              _
            $region58: #{tpu_custom_call.1} parent=51 // pred_check_branch
              %502 = sbr.rel target = $region60
            $region59: #{tpu_custom_call.1} parent=51 // pred_region
              loop: start=0, step=1, limit=1
              $region61: #{tpu_custom_call.1} parent=59 // loop_pre_header
                _
              $region62: #{tpu_custom_call.1} parent=59 // loop_header
                %s505 = sphi 0, %s509
                %p506 = scmp.ge.s32.totalorder %s505, 1
                %s510 = sphi %s481, %s481
                %s511 = sphi %s496, %s496
              $region63: #{tpu_custom_call.1} parent=59 // loop_header_branch
                %508 = sbr.rel (%p506) target = $region67
              $region64: #{tpu_custom_call.1} parent=59 // loop_body
                %v512 = vld [vmem:[%s510] sm:$0xff]
                %513 = vst [vmem:[%s511] sm:$0xff] %v512
                %v514 = vld [vmem:[%s510 + $0x8] sm:$0xff]
                %515 = vst [vmem:[%s511 + $0x10] sm:$0xff] %v514
                %v516 = vld [vmem:[%s510 + $0x10] sm:$0xff]
                %517 = vst [vmem:[%s511 + $0x20] sm:$0xff] %v516
                %v518 = vld [vmem:[%s510 + $0x18] sm:$0xff]
                %519 = vst [vmem:[%s511 + $0x30] sm:$0xff] %v518
              $region65: #{tpu_custom_call.1} parent=59 // loop_footer
                %s509 = sadd.s32 1, %s505
              $region66: #{tpu_custom_call.1} parent=59 // loop_footer_branch
                %504 = sbr.rel target = $region62
              $region67: #{tpu_custom_call.1} parent=59 // loop_exit
                _
            $region60: #{tpu_custom_call.1} parent=51 // pred_fallthru
              _
          $region52: #{tpu_custom_call.1} parent=47 // pred_fallthru
            _
          %540 = vnop
        $region48: #{tpu_custom_call.1} parent=35 // pred_fallthru
          _
        // Predicated region
        $region83: #{tpu_custom_call.1} parent=35 // pred_check
          %p541 = pneg %p173
        $region84: #{tpu_custom_call.1} parent=35 // pred_check_branch
          %543 = sbr.rel (%p541) target = $region86
        $region85: #{tpu_custom_call.1} parent=35 // pred_region
          %s544 = smul.addr %s26, 8
          %s545 = sadd.s32 %s27, %s544
          %s546 = smul.addr %s545, 8
          %s547 = scalar_lea.vmem %s5, %s546
          // Predicated region
          $region87: #{tpu_custom_call.1} parent=85 // pred_check
            _
          $region88: #{tpu_custom_call.1} parent=85 // pred_check_branch
            %549 = sbr.rel (0) target = $region90
          $region89: #{tpu_custom_call.1} parent=85 // pred_region
            // Predicated region
            $region91: #{tpu_custom_call.1} parent=89 // pred_check
              _
            $region92: #{tpu_custom_call.1} parent=89 // pred_check_branch
              %551 = sbr.rel (0) target = $region94
            $region93: #{tpu_custom_call.1} parent=89 // pred_region
              // Predicated region
              $region106: #{tpu_custom_call.1} parent=93 // pred_check
                _
              $region107: #{tpu_custom_call.1} parent=93 // pred_check_branch
                %572 = sbr.rel (0) target = $region109
              $region108: #{tpu_custom_call.1} parent=93 // pred_region
                loop: start=0, step=1, limit=1
                $region110: #{tpu_custom_call.1} parent=108 // loop_pre_header
                  _
                $region111: #{tpu_custom_call.1} parent=108 // loop_header
                  %s574 = sphi 0, %s578
                  %p575 = scmp.ge.s32.totalorder %s574, 1
                  %s579 = sphi %s485, %s485
                  %s580 = sphi %s547, %s547
                $region112: #{tpu_custom_call.1} parent=108 // loop_header_branch
                  %577 = sbr.rel (%p575) target = $region116
                $region113: #{tpu_custom_call.1} parent=108 // loop_body
                  %v581 = vld [vmem:[%s579] sm:$0xff]
                  %582 = vst [vmem:[%s580] sm:$0xff] %v581
                  %v583 = vld [vmem:[%s579 + $0x8] sm:$0xff]
                  %584 = vst [vmem:[%s580 + $0x10] sm:$0xff] %v583
                  %v585 = vld [vmem:[%s579 + $0x10] sm:$0xff]
                  %586 = vst [vmem:[%s580 + $0x20] sm:$0xff] %v585
                  %v587 = vld [vmem:[%s579 + $0x18] sm:$0xff]
                  %588 = vst [vmem:[%s580 + $0x30] sm:$0xff] %v587
                $region114: #{tpu_custom_call.1} parent=108 // loop_footer
                  %s578 = sadd.s32 1, %s574
                $region115: #{tpu_custom_call.1} parent=108 // loop_footer_branch
                  %573 = sbr.rel target = $region111
                $region116: #{tpu_custom_call.1} parent=108 // loop_exit
                  _
              $region109: #{tpu_custom_call.1} parent=93 // pred_fallthru
                _
              // Predicated region
              $region117: #{tpu_custom_call.1} parent=93 // pred_check
                _
              $region118: #{tpu_custom_call.1} parent=93 // pred_check_branch
                %590 = sbr.rel target = $region120
              $region119: #{tpu_custom_call.1} parent=93 // pred_region
                _
              $region120: #{tpu_custom_call.1} parent=93 // pred_fallthru
                _
            $region94: #{tpu_custom_call.1} parent=89 // pred_fallthru
              _
            // Predicated region
            $region95: #{tpu_custom_call.1} parent=89 // pred_check
              _
            $region96: #{tpu_custom_call.1} parent=89 // pred_check_branch
              %553 = sbr.rel target = $region98
            $region97: #{tpu_custom_call.1} parent=89 // pred_region
              loop: start=0, step=1, limit=1
              $region99: #{tpu_custom_call.1} parent=97 // loop_pre_header
                _
              $region100: #{tpu_custom_call.1} parent=97 // loop_header
                %s556 = sphi 0, %s560
                %p557 = scmp.ge.s32.totalorder %s556, 1
                %s561 = sphi %s485, %s485
                %s562 = sphi %s547, %s547
              $region101: #{tpu_custom_call.1} parent=97 // loop_header_branch
                %559 = sbr.rel (%p557) target = $region105
              $region102: #{tpu_custom_call.1} parent=97 // loop_body
                %v563 = vld [vmem:[%s561] sm:$0xff]
                %564 = vst [vmem:[%s562] sm:$0xff] %v563
                %v565 = vld [vmem:[%s561 + $0x8] sm:$0xff]
                %566 = vst [vmem:[%s562 + $0x10] sm:$0xff] %v565
                %v567 = vld [vmem:[%s561 + $0x10] sm:$0xff]
                %568 = vst [vmem:[%s562 + $0x20] sm:$0xff] %v567
                %v569 = vld [vmem:[%s561 + $0x18] sm:$0xff]
                %570 = vst [vmem:[%s562 + $0x30] sm:$0xff] %v569
              $region103: #{tpu_custom_call.1} parent=97 // loop_footer
                %s560 = sadd.s32 1, %s556
              $region104: #{tpu_custom_call.1} parent=97 // loop_footer_branch
                %555 = sbr.rel target = $region100
              $region105: #{tpu_custom_call.1} parent=97 // loop_exit
                _
            $region98: #{tpu_custom_call.1} parent=89 // pred_fallthru
              _
          $region90: #{tpu_custom_call.1} parent=85 // pred_fallthru
            _
          %591 = vnop
        $region86: #{tpu_custom_call.1} parent=35 // pred_fallthru
          _
        // Predicated region
        $region121: #{tpu_custom_call.1} parent=35 // pred_check
          %p592 = pneg %p201
        $region122: #{tpu_custom_call.1} parent=35 // pred_check_branch
          %594 = sbr.rel (%p592) target = $region124
        $region123: #{tpu_custom_call.1} parent=35 // pred_region
          %s595 = smul.addr %s26, 8
          %s596 = sadd.s32 %s27, %s595
          %s597 = smul.addr %s596, 8
          %s598 = scalar_lea.vmem %s6, %s597
          // Predicated region
          $region125: #{tpu_custom_call.1} parent=123 // pred_check
            _
          $region126: #{tpu_custom_call.1} parent=123 // pred_check_branch
            %600 = sbr.rel (0) target = $region128
          $region127: #{tpu_custom_call.1} parent=123 // pred_region
            // Predicated region
            $region129: #{tpu_custom_call.1} parent=127 // pred_check
              _
            $region130: #{tpu_custom_call.1} parent=127 // pred_check_branch
              %602 = sbr.rel (0) target = $region132
            $region131: #{tpu_custom_call.1} parent=127 // pred_region
              // Predicated region
              $region144: #{tpu_custom_call.1} parent=131 // pred_check
                _
              $region145: #{tpu_custom_call.1} parent=131 // pred_check_branch
                %623 = sbr.rel (0) target = $region147
              $region146: #{tpu_custom_call.1} parent=131 // pred_region
                loop: start=0, step=1, limit=1
                $region148: #{tpu_custom_call.1} parent=146 // loop_pre_header
                  _
                $region149: #{tpu_custom_call.1} parent=146 // loop_header
                  %s625 = sphi 0, %s629
                  %p626 = scmp.ge.s32.totalorder %s625, 1
                  %s630 = sphi %s489, %s489
                  %s631 = sphi %s598, %s598
                $region150: #{tpu_custom_call.1} parent=146 // loop_header_branch
                  %628 = sbr.rel (%p626) target = $region154
                $region151: #{tpu_custom_call.1} parent=146 // loop_body
                  %v632 = vld [vmem:[%s630] sm:$0xff]
                  %633 = vst [vmem:[%s631] sm:$0xff] %v632
                  %v634 = vld [vmem:[%s630 + $0x8] sm:$0xff]
                  %635 = vst [vmem:[%s631 + $0x10] sm:$0xff] %v634
                  %v636 = vld [vmem:[%s630 + $0x10] sm:$0xff]
                  %637 = vst [vmem:[%s631 + $0x20] sm:$0xff] %v636
                  %v638 = vld [vmem:[%s630 + $0x18] sm:$0xff]
                  %639 = vst [vmem:[%s631 + $0x30] sm:$0xff] %v638
                $region152: #{tpu_custom_call.1} parent=146 // loop_footer
                  %s629 = sadd.s32 1, %s625
                $region153: #{tpu_custom_call.1} parent=146 // loop_footer_branch
                  %624 = sbr.rel target = $region149
                $region154: #{tpu_custom_call.1} parent=146 // loop_exit
                  _
              $region147: #{tpu_custom_call.1} parent=131 // pred_fallthru
                _
              // Predicated region
              $region155: #{tpu_custom_call.1} parent=131 // pred_check
                _
              $region156: #{tpu_custom_call.1} parent=131 // pred_check_branch
                %641 = sbr.rel target = $region158
              $region157: #{tpu_custom_call.1} parent=131 // pred_region
                _
              $region158: #{tpu_custom_call.1} parent=131 // pred_fallthru
                _
            $region132: #{tpu_custom_call.1} parent=127 // pred_fallthru
              _
            // Predicated region
            $region133: #{tpu_custom_call.1} parent=127 // pred_check
              _
            $region134: #{tpu_custom_call.1} parent=127 // pred_check_branch
              %604 = sbr.rel target = $region136
            $region135: #{tpu_custom_call.1} parent=127 // pred_region
              loop: start=0, step=1, limit=1
              $region137: #{tpu_custom_call.1} parent=135 // loop_pre_header
                _
              $region138: #{tpu_custom_call.1} parent=135 // loop_header
                %s607 = sphi 0, %s611
                %p608 = scmp.ge.s32.totalorder %s607, 1
                %s612 = sphi %s489, %s489
                %s613 = sphi %s598, %s598
              $region139: #{tpu_custom_call.1} parent=135 // loop_header_branch
                %610 = sbr.rel (%p608) target = $region143
              $region140: #{tpu_custom_call.1} parent=135 // loop_body
                %v614 = vld [vmem:[%s612] sm:$0xff]
                %615 = vst [vmem:[%s613] sm:$0xff] %v614
                %v616 = vld [vmem:[%s612 + $0x8] sm:$0xff]
                %617 = vst [vmem:[%s613 + $0x10] sm:$0xff] %v616
                %v618 = vld [vmem:[%s612 + $0x10] sm:$0xff]
                %619 = vst [vmem:[%s613 + $0x20] sm:$0xff] %v618
                %v620 = vld [vmem:[%s612 + $0x18] sm:$0xff]
                %621 = vst [vmem:[%s613 + $0x30] sm:$0xff] %v620
              $region141: #{tpu_custom_call.1} parent=135 // loop_footer
                %s611 = sadd.s32 1, %s607
              $region142: #{tpu_custom_call.1} parent=135 // loop_footer_branch
                %606 = sbr.rel target = $region138
              $region143: #{tpu_custom_call.1} parent=135 // loop_exit
                _
            $region136: #{tpu_custom_call.1} parent=127 // pred_fallthru
              _
          $region128: #{tpu_custom_call.1} parent=123 // pred_fallthru
            _
          %642 = vnop
        $region124: #{tpu_custom_call.1} parent=35 // pred_fallthru
          _
      $region36: #{tpu_custom_call.1} parent=5 // pred_fallthru
        _
      %p643 = scmp.le.s32.totalorder 2, %s17
      // Predicated region
      $region159: #{tpu_custom_call.1} parent=5 // pred_check
        %p644 = pneg %p643
      $region160: #{tpu_custom_call.1} parent=5 // pred_check_branch
        %646 = sbr.rel (%p644) target = $region162
      $region161: #{tpu_custom_call.1} parent=5 // pred_region
        %s647 = ssub.s32 %s17, 2
        // Predicated region
        $region163: #{tpu_custom_call.1} parent=161 // pred_check
          %p648 = pneg %p151
        $region164: #{tpu_custom_call.1} parent=161 // pred_check_branch
          %650 = sbr.rel (%p648) target = $region166
        $region165: #{tpu_custom_call.1} parent=161 // pred_region
          %s651 = sand.u32 %s136, 1
          %s652 = sand.u32 %s136, 1
          %s653 = smul.addr %s652, 32
          %s654 = scalar_lea.vmem [#allocation6], %s653
        $region166: #{tpu_custom_call.1} parent=161 // pred_fallthru
          _
        // Predicated region
        $region167: #{tpu_custom_call.1} parent=161 // pred_check
          %p655 = pneg %p179
        $region168: #{tpu_custom_call.1} parent=161 // pred_check_branch
          %657 = sbr.rel (%p655) target = $region170
        $region169: #{tpu_custom_call.1} parent=161 // pred_region
          %s658 = sand.u32 %s164, 1
          %s659 = sand.u32 %s164, 1
          %s660 = smul.addr %s659, 32
          %s661 = scalar_lea.vmem [#allocation7], %s660
        $region170: #{tpu_custom_call.1} parent=161 // pred_fallthru
          _
        // Predicated region
        $region171: #{tpu_custom_call.1} parent=161 // pred_check
          %p662 = pneg %p207
        $region172: #{tpu_custom_call.1} parent=161 // pred_check_branch
          %664 = sbr.rel (%p662) target = $region174
        $region173: #{tpu_custom_call.1} parent=161 // pred_region
          %s665 = sand.u32 %s192, 1
          %s666 = sand.u32 %s192, 1
          %s667 = smul.addr %s666, 32
          %s668 = scalar_lea.vmem [#allocation8], %s667
        $region174: #{tpu_custom_call.1} parent=161 // pred_fallthru
          _
      $region162: #{tpu_custom_call.1} parent=5 // pred_fallthru
        _
    $region6: #{tpu_custom_call.1} parent=1 // loop_footer
      %s21 = sadd.s32 1, %s17
    $region7: #{tpu_custom_call.1} parent=1 // loop_footer_branch
      %16 = sbr.rel target = $region3
    $region8: #{tpu_custom_call.1} parent=1 // loop_exit
      _
    %669 = vsyncpa [#allocation3], 1
    %s670 = scalar_lea.sflag [#allocation3], 1
    %671 = vsyncpa %s670, 1
    %672 = vsyncpa [#allocation5], 1

</llo_original>
